<compile_context>
chip_gen: v7x
topology: tpu7x:2x2x1
jax: 0.10.0
libtpu: 0.0.40
codegen_flags: <defaults>
</compile_context>

<pallas_src>
import functools

import jax
import jax.numpy as jnp
from jax.experimental import pallas as pl
from jax.experimental.pallas import tpu as pltpu


_TARGET_TILE_BYTES = 2 * 1024 * 1024  # per-input, per-tile DMA buffer budget


def _round_up(x: int, m: int) -> int:
    return ((x + m - 1) // m) * m


def _cdiv(a: int, b: int) -> int:
    return (a + b - 1) // b


def _loss_kernel(abc_ref, out_ref, tgt_ref, part_ref, *, B, N):
    # abc_ref : SMEM (3,)   f32  [a, b, c]
    # out_ref : VMEM (TB,TN)     tile of `output` (native dtype)
    # tgt_ref : VMEM (TB,TN)     tile of `target` (native dtype)
    # part_ref: SMEM (1, 2) f32  per-tile partial sums [sum(diff^2), sum(reg^2)]
    a = abc_ref[0]
    b = abc_ref[1]
    c = abc_ref[2]

    i = pl.program_id(0)  # row-tile index
    j = pl.program_id(1)  # col-tile index

    # In-kernel cast to f32 (free VPU filler); HBM traffic stays narrow dtype.
    out_blk = out_ref[...].astype(jnp.float32)
    tgt_blk = tgt_ref[...].astype(jnp.float32)
    TB, TN = out_blk.shape

    col = jax.lax.broadcasted_iota(jnp.int32, (1, TN), 1) + j * TN   # (1, TN)
    row = jax.lax.broadcasted_iota(jnp.int32, (TB, 1), 0) + i * TB   # (TB, 1)
    valid = (row < B) & (col < N)                                    # (TB, TN)

    # ---- MSE partial. Must be masked: edge-tile VMEM beyond the array bounds
    # contains unspecified data (there is no host-side zero padding).
    diff = jnp.where(valid, out_blk - tgt_blk, 0.0)
    mse_part = jnp.sum(diff * diff)

    # ---- Shape-prior regularizer partial. Polynomial depends only on the
    # global column index: evaluate once as a (1, TN) row and broadcast.
    colf = col.astype(jnp.float32) + 1.0                             # i + 1
    poly = a * colf * colf + b * colf + c                            # (1, TN)
    reg = jnp.where(valid, poly - out_blk, 0.0)
    reg_part = jnp.sum(reg * reg)

    part_ref[0, 0] = mse_part
    part_ref[0, 1] = reg_part


def shape_prior_loss(output, target, a, b, c):
    """output, target: (B, N) arrays (any float dtype). a, b, c: scalars."""
    output = jnp.asarray(output)
    target = jnp.asarray(target)
    B, N = output.shape
    itemsize = max(output.dtype.itemsize, target.dtype.itemsize)

    # ---- tiling: (8,128)-aligned blocks over the UNPADDED arrays ----------
    TN = min(_round_up(N, 128), 2048)          # lane-tile width (mult. of 128)
    n_col = _cdiv(N, TN)

    # Sublane tile height: bounded by the per-tile byte budget, and capped so
    # the leading (parallel / megacore) axis gets >= 2 tiles and the grid has
    # roughly >= 8 steps whenever B permits (feeds both v7x TensorCores and
    # keeps the double-buffer pipeline busy).
    budget_rows = max(8, ((_TARGET_TILE_BYTES // (TN * itemsize)) // 8) * 8)
    if B > 8:
        want_row_tiles = max(2, 8 // max(n_col, 1))
        rows_cap = max(8, _round_up(_cdiv(B, want_row_tiles), 8))
    else:
        rows_cap = 8
    TB = min(budget_rows, rows_cap, _round_up(B, 8))
    n_row = _cdiv(B, TB)
    n_tiles = n_row * n_col

    abc = jnp.stack([jnp.asarray(v, jnp.float32).reshape(()) for v in (a, b, c)])

    kernel = functools.partial(_loss_kernel, B=B, N=N)

    parts = pl.pallas_call(
        kernel,
        out_shape=jax.ShapeDtypeStruct((n_tiles, 2), jnp.float32),
        grid_spec=pltpu.PrefetchScalarGridSpec(
            num_scalar_prefetch=0,
            grid=(n_row, n_col),
            in_specs=[
                pl.BlockSpec(memory_space=pltpu.MemorySpace.SMEM),   # abc
                pl.BlockSpec((TB, TN), lambda i, j: (i, j)),         # output tile
                pl.BlockSpec((TB, TN), lambda i, j: (i, j)),         # target tile
            ],
            out_specs=pl.BlockSpec(
                (1, 2), lambda i, j: (i * n_col + j, 0),
                memory_space=pltpu.MemorySpace.SMEM),
        ),
        compiler_params=pltpu.CompilerParams(
            dimension_semantics=("parallel", "parallel")),
        cost_estimate=pl.CostEstimate(
            flops=10 * B * N,
            bytes_accessed=B * N * (output.dtype.itemsize + target.dtype.itemsize)
            + n_tiles * 2 * 4,
            transcendentals=0),
    )(abc, output, target)

    # Tiny final reduction + scaling in plain JAX (keeps grid axes parallel).
    totals = jnp.sum(parts, axis=0)
    mse = totals[0] / jnp.float32(B * N)
    l_reg = totals[1] / jnp.float32(B)
    return mse + jnp.float32(1e-6) * l_reg


def _reference(output, target, a, b, c):
    output = output.astype(jnp.float32)
    target = target.astype(jnp.float32)
    mse = jnp.mean((output - target) ** 2)
    N = output.shape[1]
    i = jnp.arange(1, N + 1, dtype=jnp.float32)
    poly = a * i * i + b * i + c                           # (N,)
    l_reg = jnp.mean(jnp.sum((poly[None, :] - output) ** 2, axis=1))
    return mse + 1e-6 * l_reg


if __name__ == "__main__":
    # Deterministic parameter init, matching reset_params(): a = b = c = 0.1
    a, b, c = 0.1, 0.1, 0.1
    key = jax.random.PRNGKey(0)
    k1, k2, k3, k4, k5, k6 = jax.random.split(key, 6)

    # Case 1: small (batch, seq) consistent with the module's forward.
    B, N = 8, 16
    out1 = jax.random.normal(k1, (B, N), dtype=jnp.float32)
    tgt1 = jax.random.normal(k2, (B, N), dtype=jnp.float32)
    loss1 = shape_prior_loss(out1, tgt1, a, b, c)
    jax.block_until_ready(loss1)
    ref1 = _reference(out1, tgt1, a, b, c)
    assert jnp.allclose(loss1, ref1, rtol=1e-5, atol=1e-6), (loss1, ref1)

    # Case 2: ragged shape -> exercises in-kernel edge masking (no host pad).
    B2, N2 = 5, 37
    out2 = jax.random.normal(k3, (B2, N2), dtype=jnp.float32)
    tgt2 = jax.random.normal(k4, (B2, N2), dtype=jnp.float32)
    loss2 = shape_prior_loss(out2, tgt2, a, b, c)
    jax.block_until_ready(loss2)
    ref2 = _reference(out2, tgt2, a, b, c)
    assert jnp.allclose(loss2, ref2, rtol=1e-5, atol=1e-6), (loss2, ref2)

    # Case 3: bf16 inputs, multi-row-tile grid -> exercises native-dtype
    # streaming + in-kernel cast, column edge masking, and >=2 row tiles.
    B3, N3 = 48, 200
    out3 = jax.random.normal(k5, (B3, N3), dtype=jnp.bfloat16)
    tgt3 = jax.random.normal(k6, (B3, N3), dtype=jnp.bfloat16)
    loss3 = shape_prior_loss(out3, tgt3, a, b, c)
    jax.block_until_ready(loss3)
    ref3 = _reference(out3, tgt3, a, b, c)
    assert jnp.allclose(loss3, ref3, rtol=1e-4, atol=1e-5), (loss3, ref3)

    print("KERNEL_OK")
</pallas_src>

<mosaic_0001>
module attributes {stable_mosaic.version = 11 : i64} {
  func.func @_loss_kernel(%arg0: i32, %arg1: i32, %arg2: memref<3xf32, #tpu.memory_space<smem>>, %arg3: memref<8x128xf32, #tpu.memory_space<vmem>>, %arg4: memref<8x128xf32, #tpu.memory_space<vmem>>, %arg5: memref<1x2xf32, #tpu.memory_space<smem>>) attributes {dimension_semantics = [#tpu.dimension_semantics<parallel>, #tpu.dimension_semantics<parallel>], iteration_bounds = array<i64: 1, 1>, scalar_prefetch = 0 : i64, scratch_operands = 0 : i64, tpu.core_type = #tpu.core_type<tc>, window_params = [{transform_indices = @transform_0, window_bounds = array<i64: 3>}, {transform_indices = @transform_1, window_bounds = array<i64: 8, 128>}, {transform_indices = @transform_2, window_bounds = array<i64: 8, 128>}, {transform_indices = @transform_3, window_bounds = array<i64: 1, 2>}]} {
    %c0 = arith.constant 0 : index
    %0 = memref.load %arg2[%c0] : memref<3xf32, #tpu.memory_space<smem>>
    %c1 = arith.constant 1 : index
    %1 = memref.load %arg2[%c1] : memref<3xf32, #tpu.memory_space<smem>>
    %c2 = arith.constant 2 : index
    %2 = memref.load %arg2[%c2] : memref<3xf32, #tpu.memory_space<smem>>
    %c0_0 = arith.constant 0 : index
    %c0_1 = arith.constant 0 : index
    %3 = vector.load %arg3[%c0_0, %c0_1] : memref<8x128xf32, #tpu.memory_space<vmem>>, vector<8x128xf32>
    %c0_2 = arith.constant 0 : index
    %c0_3 = arith.constant 0 : index
    %4 = vector.load %arg4[%c0_2, %c0_3] : memref<8x128xf32, #tpu.memory_space<vmem>>, vector<8x128xf32>
    %5 = tpu.iota {dimensions = array<i32: 1>} : vector<1x128xi32>
    %c128_i32 = arith.constant 128 : i32
    %6 = arith.muli %arg1, %c128_i32 : i32
    %7 = vector.broadcast %6 : i32 to vector<1x128xi32>
    %8 = arith.addi %5, %7 : vector<1x128xi32>
    %9 = tpu.iota {dimensions = array<i32: 0>} : vector<8x1xi32>
    %c8_i32 = arith.constant 8 : i32
    %10 = arith.muli %arg0, %c8_i32 : i32
    %11 = vector.broadcast %10 : i32 to vector<8x1xi32>
    %12 = arith.addi %9, %11 : vector<8x1xi32>
    %c8_i32_4 = arith.constant 8 : i32
    %13 = vector.broadcast %c8_i32_4 : i32 to vector<8x1xi32>
    %14 = arith.cmpi slt, %12, %13 : vector<8x1xi32>
    %c16_i32 = arith.constant 16 : i32
    %15 = vector.broadcast %c16_i32 : i32 to vector<1x128xi32>
    %16 = arith.cmpi slt, %8, %15 : vector<1x128xi32>
    %17 = vector.broadcast %14 : vector<8x1xi1> to vector<8x128xi1>
    %18 = vector.broadcast %16 : vector<1x128xi1> to vector<8x128xi1>
    %19 = arith.andi %17, %18 : vector<8x128xi1>
    %20 = arith.subf %3, %4 : vector<8x128xf32>
    %cst = arith.constant 0.000000e+00 : f32
    %21 = vector.broadcast %cst : f32 to vector<8x128xf32>
    %22 = arith.select %19, %20, %21 : vector<8x128xi1>, vector<8x128xf32>
    %23 = arith.mulf %22, %22 : vector<8x128xf32>
    %24 = vector.shape_cast %23 : vector<8x128xf32> to vector<1x8x128xf32>
    %cst_5 = arith.constant dense<0.000000e+00> : vector<1xf32>
    %25 = vector.multi_reduction <add>, %24, %cst_5 [1, 2] : vector<1x8x128xf32> to vector<1xf32>
    %26 = vector.shape_cast %25 : vector<1xf32> to vector<1x1x1xf32>
    %27 = vector.extract %26[0, 0, 0] : f32 from vector<1x1x1xf32>
    %28 = arith.sitofp %8 : vector<1x128xi32> to vector<1x128xf32>
    %cst_6 = arith.constant 1.000000e+00 : f32
    %29 = vector.broadcast %cst_6 : f32 to vector<1x128xf32>
    %30 = arith.addf %28, %29 : vector<1x128xf32>
    %31 = vector.broadcast %0 : f32 to vector<1x128xf32>
    %32 = arith.mulf %31, %30 : vector<1x128xf32>
    %33 = arith.mulf %32, %30 : vector<1x128xf32>
    %34 = vector.broadcast %1 : f32 to vector<1x128xf32>
    %35 = arith.mulf %34, %30 : vector<1x128xf32>
    %36 = arith.addf %33, %35 : vector<1x128xf32>
    %37 = vector.broadcast %2 : f32 to vector<1x128xf32>
    %38 = arith.addf %36, %37 : vector<1x128xf32>
    %39 = vector.broadcast %38 : vector<1x128xf32> to vector<8x128xf32>
    %40 = arith.subf %39, %3 : vector<8x128xf32>
    %cst_7 = arith.constant 0.000000e+00 : f32
    %41 = vector.broadcast %cst_7 : f32 to vector<8x128xf32>
    %42 = arith.select %19, %40, %41 : vector<8x128xi1>, vector<8x128xf32>
    %43 = arith.mulf %42, %42 : vector<8x128xf32>
    %44 = vector.shape_cast %43 : vector<8x128xf32> to vector<1x8x128xf32>
    %cst_8 = arith.constant dense<0.000000e+00> : vector<1xf32>
    %45 = vector.multi_reduction <add>, %44, %cst_8 [1, 2] : vector<1x8x128xf32> to vector<1xf32>
    %46 = vector.shape_cast %45 : vector<1xf32> to vector<1x1x1xf32>
    %47 = vector.extract %46[0, 0, 0] : f32 from vector<1x1x1xf32>
    %c0_9 = arith.constant 0 : index
    %c0_10 = arith.constant 0 : index
    %48 = memref.load %arg5[%c0_9, %c0_10] : memref<1x2xf32, #tpu.memory_space<smem>>
    memref.store %27, %arg5[%c0_9, %c0_10] : memref<1x2xf32, #tpu.memory_space<smem>>
    %c0_11 = arith.constant 0 : index
    %c1_12 = arith.constant 1 : index
    %49 = memref.load %arg5[%c0_11, %c1_12] : memref<1x2xf32, #tpu.memory_space<smem>>
    memref.store %47, %arg5[%c0_11, %c1_12] : memref<1x2xf32, #tpu.memory_space<smem>>
    return
  }
  func.func @transform_0(%arg0: i32, %arg1: i32) -> i32 {
    %c0_i32 = arith.constant 0 : i32
    %c0_i32_0 = arith.constant 0 : i32
    return %c0_i32 : i32
  }
  func.func @transform_1(%arg0: i32, %arg1: i32) -> (i32, i32) {
    %c0_i32 = arith.constant 0 : i32
    return %arg0, %arg1 : i32, i32
  }
  func.func @transform_2(%arg0: i32, %arg1: i32) -> (i32, i32) {
    %c0_i32 = arith.constant 0 : i32
    return %arg0, %arg1 : i32, i32
  }
  func.func @transform_3(%arg0: i32, %arg1: i32) -> (i32, i32) {
    %c1_i32 = arith.constant 1 : i32
    %0 = arith.muli %arg0, %c1_i32 : i32
    %1 = arith.addi %0, %arg1 : i32
    %c0_i32 = arith.constant 0 : i32
    %c0_i32_0 = arith.constant 0 : i32
    return %1, %c0_i32 : i32, i32
  }
}

</mosaic_0001>

<llo_original>
// kernel: tpu_custom_call.1
$region0: #{tpu_custom_call.1}
  #allocation0 [shape = 'u32[]', space=smem, size = 0x4, offset = 0x4, fixed_abs, tag = 'smem constant byte address 0x4 - core index']
  #allocation1 [shape = 'u32[144,128]{1,0:T(1,128)}', space=vmem, size = 0x12000, scoped, tag = 'internal scratch']
  %s0 = inlined_call_operand.hbm [shape: f32[3], index: 0, kind: input, shape index: {}]
  %s1 = inlined_call_operand.hbm [shape: f32[8,16], index: 1, kind: input, shape index: {}]
  %s2 = inlined_call_operand.hbm [shape: f32[8,16], index: 2, kind: input, shape index: {}]
  %s3 = inlined_call_operand.hbm [shape: f32[1,2], index: 3, kind: output, shape index: {}]
  %s4 = sld [smem:[#allocation0]]
  $region34: #{tpu_custom_call.1} parent=0
    _
  %s6 = ssub.s32 1, %s4
  %s7 = scalar_select 0, %s6, %s4
  $region1: #{tpu_custom_call.1} parent=0
    #allocation2 [shape = 'u8[512]{0}', space=smem, size = 0x200, scoped, tag = 'input window, operand 0, single buffered']
    #allocation3 [shape = 's32[1]{0}', space=sflag, size = 0x4, scoped, tag = 'scoped memory for tpu_custom_call.1']
    #allocation4 [shape = 's32[1]{0}', space=sflag, size = 0x4, scoped, tag = 'scoped memory for tpu_custom_call.1']
    #allocation5 [shape = 's32[1]{0}', space=sflag, size = 0x4, scoped, tag = 'scoped memory for tpu_custom_call.1']
    #allocation6 [shape = 'u8[4096]{0}', space=vmem, size = 0x1000, scoped, tag = 'input window, operand 1, single buffered']
    #allocation7 [shape = 'u8[4096]{0}', space=vmem, size = 0x1000, scoped, tag = 'input window, operand 2, single buffered']
    #allocation8 [shape = 's32[1]{0}', space=sflag, size = 0x4, scoped, tag = 'scoped memory for tpu_custom_call.1']
    #allocation9 [shape = 'u8[512]{0}', space=smem, size = 0x200, scoped, tag = 'output window, operand 0, single buffered']
    %8 = vsyncpa [#allocation4], 0
    %9 = vsyncpa [#allocation3], 0
    %10 = vsyncpa [#allocation8], 0
    %11 = vsyncpa [#allocation5], 0
    // Predicated region
    $region2: #{tpu_custom_call.1} parent=1 // pred_check
      _
    $region3: #{tpu_custom_call.1} parent=1 // pred_check_branch
      %13 = sbr.rel (0) target = $region5
    $region4: #{tpu_custom_call.1} parent=1 // pred_region
      %s15 = ssub.s32 16, 16
      %16 = vsyncadd [#allocation4], %s15
      %19 = dma.hbm_to_smem %s0, 16, [#allocation2], [#allocation4]
    $region5: #{tpu_custom_call.1} parent=1 // pred_fallthru
      _
    // Predicated region
    $region6: #{tpu_custom_call.1} parent=1 // pred_check
      _
    $region7: #{tpu_custom_call.1} parent=1 // pred_check_branch
      %21 = sbr.rel (0) target = $region9
    $region8: #{tpu_custom_call.1} parent=1 // pred_region
      %s23 = ssub.s32 128, 128
      %24 = vsyncadd [#allocation3], %s23
      %s26 = sshll.u32 [#allocation6], 4
      %s27 = int_to_ptr.vmem [resolvable:$true] %s26
      %29 = dma.hbm_to_vmem [thread:$0]  %s1, 128, %s27, [#allocation3]
    $region9: #{tpu_custom_call.1} parent=1 // pred_fallthru
      _
    // Predicated region
    $region10: #{tpu_custom_call.1} parent=1 // pred_check
      _
    $region11: #{tpu_custom_call.1} parent=1 // pred_check_branch
      %31 = sbr.rel (0) target = $region13
    $region12: #{tpu_custom_call.1} parent=1 // pred_region
      %s33 = ssub.s32 128, 128
      %34 = vsyncadd [#allocation8], %s33
      %s36 = sshll.u32 [#allocation7], 4
      %s37 = int_to_ptr.vmem [resolvable:$true] %s36
      %39 = dma.hbm_to_vmem [thread:$0]  %s2, 128, %s37, [#allocation8]
    $region13: #{tpu_custom_call.1} parent=1 // pred_fallthru
      _
    // Predicated region
    $region14: #{tpu_custom_call.1} parent=1 // pred_check
      _
    $region15: #{tpu_custom_call.1} parent=1 // pred_check_branch
      %41 = sbr.rel (0) target = $region17
    $region16: #{tpu_custom_call.1} parent=1 // pred_region
      %42 = dma.done [#allocation4], 16
    $region17: #{tpu_custom_call.1} parent=1 // pred_fallthru
      _
    // Predicated region
    $region18: #{tpu_custom_call.1} parent=1 // pred_check
      _
    $region19: #{tpu_custom_call.1} parent=1 // pred_check_branch
      %44 = sbr.rel (0) target = $region21
    $region20: #{tpu_custom_call.1} parent=1 // pred_region
      %45 = dma.done [#allocation3], 128
    $region21: #{tpu_custom_call.1} parent=1 // pred_fallthru
      _
    // Predicated region
    $region22: #{tpu_custom_call.1} parent=1 // pred_check
      _
    $region23: #{tpu_custom_call.1} parent=1 // pred_check_branch
      %47 = sbr.rel (0) target = $region25
    $region24: #{tpu_custom_call.1} parent=1 // pred_region
      %48 = dma.done [#allocation8], 128
    $region25: #{tpu_custom_call.1} parent=1 // pred_fallthru
      _
    %49 = sfence
    %s50 = sadd.s32 0, 0
    %s51 = sld [smem:[#allocation2]]
    %s52 = sld [smem:[#allocation2 + $0x1]]
    %s53 = sld [smem:[#allocation2 + $0x2]]
    %v54 = vld [vmem:[#allocation6] sm:$0xff]
    %v55 = vld [vmem:[#allocation7] sm:$0xff]
    %v56 = vlaneseq
    %v57 = vand.u32 %v56, 127
    %s58 = smul.u32 0, 128
    %v59 = vstv %s58
    %v60 = vadd.s32 %v57, %v59
    %v61 = vlaneseq
    %v62 = vshrl.u32 %v61, 7
    %s63 = smul.u32 0, 8
    %v64 = vstv %s63
    %v65 = vadd.s32 %v62, %v64
    %vm66 = vcmp.lt.s32.totalorder %v65, 8
    %vm67 = vcmp.lt.s32.totalorder %v60, 16
    %v68 = vsel %vm66, 1, 0
    %vm69 = vcmp.eq.s32.totalorder %v68, 1
    %v70 = vsel %vm67, 1, 0
    %vm71 = vcmp.eq.s32.totalorder %v70, 1
    %vm72 = vmand %vm69, %vm71
    %v73 = vsub.f32 %v54, %v55
    %v74 = vsel %vm72, %v73, 0.0
    %v75 = vmul.f32 %v74, %v74
    %76 = vadd.xlane.f32.xlu0 %v75
    %v77 = vpop.xlane.xlu0 %76
    %v78 = vrot.slane %v77, 4
    %v79 = vadd.f32 %v77, %v78
    %v80 = vrot.slane %v79, 2
    %v81 = vadd.f32 %v79, %v80
    %v82 = vrot.slane %v81, 1
    %v83 = vadd.f32 %v81, %v82
    %s84 = vtos %v83
    %v85 = vcvt.s32.f32 %v60
    %v86 = vadd.f32 %v85, 1.0
    %v87 = vstv %s51
    %v88 = vmul.f32 %v87, %v86
    %v89 = vmul.f32 %v88, %v86
    %v90 = vstv %s52
    %v91 = vmul.f32 %v90, %v86
    %v92 = vadd.f32 %v89, %v91
    %v93 = vstv %s53
    %v94 = vadd.f32 %v92, %v93
    %v95 = vsub.f32 %v94, %v54
    %v96 = vsel %vm72, %v95, 0.0
    %v97 = vmul.f32 %v96, %v96
    %98 = vadd.xlane.f32.xlu0 %v97
    %v99 = vpop.xlane.xlu0 %98
    %v100 = vrot.slane %v99, 4
    %v101 = vadd.f32 %v99, %v100
    %v102 = vrot.slane %v101, 2
    %v103 = vadd.f32 %v101, %v102
    %v104 = vrot.slane %v103, 1
    %v105 = vadd.f32 %v103, %v104
    %s106 = vtos %v105
    %s107 = scalar_lea.smem [#allocation9], 0
    %108 = sst [smem:[%s107]] %s84
    %s109 = scalar_lea.smem [#allocation9], 1
    %110 = sst [smem:[%s109]] %s106
    // Predicated region
    $region26: #{tpu_custom_call.1} parent=1 // pred_check
      _
    $region27: #{tpu_custom_call.1} parent=1 // pred_check_branch
      %112 = sbr.rel (0) target = $region29
    $region28: #{tpu_custom_call.1} parent=1 // pred_region
      %s113 = sadd.s32 0, 0
      %s115 = ssub.s32 16, 16
      %116 = vsyncadd [#allocation5], %s115
      %s117 = smul.addr %s113, 16
      %s118 = scalar_lea.hbm %s3, %s117
      %121 = dma.smem_to_hbm [#allocation9], 16, %s118, [#allocation5]
    $region29: #{tpu_custom_call.1} parent=1 // pred_fallthru
      _
    // Predicated region
    $region30: #{tpu_custom_call.1} parent=1 // pred_check
      _
    $region31: #{tpu_custom_call.1} parent=1 // pred_check_branch
      %123 = sbr.rel (0) target = $region33
    $region32: #{tpu_custom_call.1} parent=1 // pred_region
      %124 = dma.done [#allocation5], 16
    $region33: #{tpu_custom_call.1} parent=1 // pred_fallthru
      _
    %125 = sfence
    %126 = vsyncpa [#allocation3], 1
    %127 = vsyncpa [#allocation8], 1
    %128 = vsyncpa [#allocation4], 1
    %129 = vsyncpa [#allocation5], 1

</llo_original>
